<compile_context>
chip_gen: v7x
topology: tpu7x:2x2x1
jax: 0.10.0
libtpu: 0.0.40
codegen_flags: <defaults>
</compile_context>

<pallas_src>
import functools

import jax
import jax.numpy as jnp
from jax.experimental import pallas as pl
from jax.experimental.pallas import tpu as pltpu


def _layernorm2x_kernel(x_ref, w1_ref, b1_ref, w2_ref, b2_ref, o_ref, *, eps, inv_c, C):
    # x_ref: (1, C, TS); w/b refs: (C, 1); o_ref: (1, 2C, TS)
    x = x_ref[0].astype(jnp.float32)                        # (C, TS)

    mu = jnp.sum(x, axis=0, keepdims=True) * inv_c          # (1, TS)
    xc = x - mu
    var = jnp.sum(xc * xc, axis=0, keepdims=True) * inv_c   # biased variance
    inv = jax.lax.rsqrt(var + eps)                          # EUP (free slot)
    y = xc * inv                                            # (C, TS)

    w1 = w1_ref[...].astype(jnp.float32)                    # (C, 1) -> lane broadcast
    b1 = b1_ref[...].astype(jnp.float32)
    w2 = w2_ref[...].astype(jnp.float32)
    b2 = b2_ref[...].astype(jnp.float32)

    o_ref[0, :C, :] = (w1 * y + b1).astype(o_ref.dtype)     # channels [0, C)
    o_ref[0, C:, :] = (w2 * y + b2).astype(o_ref.dtype)     # channels [C, 2C)


def _choose_spatial_tile(S, C, itemsize, target_block_bytes):
    """Largest lane-dense tile with ~target_block_bytes of input per grid step."""
    ts = max(1, target_block_bytes // (C * itemsize))
    ts = max(128, (ts // 128) * 128)   # multiple of 128 lanes
    if ts >= S:
        ts = S                         # full spatial extent (always legal)
    return ts


def layernorm2x(x, weight1, bias1, weight2, bias2, eps=1e-5, *,
                target_block_bytes=2 * 1024 * 1024):
    """x: (N, C, H, W); weight*/bias*: (C,). Returns (N, 2*C, H, W)."""
    N, C, H, W = x.shape
    S = H * W
    x3 = x.reshape(N, C, S)            # free view of contiguous NCHW

    itemsize = jnp.dtype(x.dtype).itemsize
    ts = _choose_spatial_tile(S, C, itemsize, target_block_bytes)
    grid = (N, pl.cdiv(S, ts))         # partial last block handled by Pallas masking

    w1 = weight1.reshape(C, 1)
    b1 = bias1.reshape(C, 1)
    w2 = weight2.reshape(C, 1)
    b2 = bias2.reshape(C, 1)

    kernel = functools.partial(_layernorm2x_kernel, eps=eps, inv_c=1.0 / C, C=C)
    param_spec = pl.BlockSpec((C, 1), lambda n, s: (0, 0))

    out = pl.pallas_call(
        kernel,
        out_shape=jax.ShapeDtypeStruct((N, 2 * C, S), x.dtype),
        grid_spec=pltpu.PrefetchScalarGridSpec(
            num_scalar_prefetch=0,
            grid=grid,
            in_specs=[
                pl.BlockSpec((1, C, ts), lambda n, s: (n, 0, s)),
                param_spec,   # weight1
                param_spec,   # bias1
                param_spec,   # weight2
                param_spec,   # bias2
            ],
            out_specs=pl.BlockSpec((1, 2 * C, ts), lambda n, s: (n, 0, s)),
        ),
        compiler_params=pltpu.CompilerParams(
            dimension_semantics=("parallel", "parallel"),
            vmem_limit_bytes=32 * 1024 * 1024,
        ),
    )(x3, w1, b1, w2, b2)

    return out.reshape(N, 2 * C, H, W)


def layernorm2x_ref(x, w1, b1, w2, b2, eps=1e-5):
    """Pure-JAX reference mirroring the PyTorch LayerNorm2x forward exactly."""
    N, C, H, W = x.shape
    xt = jnp.transpose(x.reshape(N, C, H * W), (0, 2, 1))   # b (hw) c
    mu = jnp.mean(xt, axis=-1, keepdims=True)
    var = jnp.mean((xt - mu) ** 2, axis=-1, keepdims=True)  # unbiased=False
    y = (xt - mu) / jnp.sqrt(var + eps)
    x1 = y * w1.reshape(1, 1, C) + b1.reshape(1, 1, C)
    x2 = y * w2.reshape(1, 1, C) + b2.reshape(1, 1, C)
    out = jnp.concatenate([x1, x2], axis=-1)                # (N, HW, 2C)
    return jnp.transpose(out, (0, 2, 1)).reshape(N, 2 * C, H, W)


if __name__ == "__main__":
    key = jax.random.PRNGKey(0)
    k_x, k_w1, k_b1, k_w2, k_b2, k_x2 = jax.random.split(key, 6)

    N, C, H, W = 2, 4, 16, 16
    x = jax.random.normal(k_x, (N, C, H, W), dtype=jnp.float32)

    # Parameters (nn.Parameter init is ones/zeros; perturbed deterministically so the
    # two affine branches are distinguishable in the correctness check).
    w1 = 1.0 + 0.1 * jax.random.normal(k_w1, (C,), dtype=jnp.float32)
    b1 = 0.1 * jax.random.normal(k_b1, (C,), dtype=jnp.float32)
    w2 = 1.0 + 0.1 * jax.random.normal(k_w2, (C,), dtype=jnp.float32)
    b2 = 0.1 * jax.random.normal(k_b2, (C,), dtype=jnp.float32)

    out = jax.block_until_ready(layernorm2x(x, w1, b1, w2, b2, eps=1e-5))
    ref = layernorm2x_ref(x, w1, b1, w2, b2, eps=1e-5)
    assert out.shape == (N, 2 * C, H, W)
    assert jnp.allclose(out, ref, atol=1e-5, rtol=1e-5), "mismatch vs reference"

    # Also exercise the partial-last-block path (S=300, 128-lane tiles -> masked tail).
    H2, W2 = 15, 20
    x2 = jax.random.normal(k_x2, (N, C, H2, W2), dtype=jnp.float32)
    out2 = jax.block_until_ready(
        layernorm2x(x2, w1, b1, w2, b2, eps=1e-5, target_block_bytes=2048))
    ref2 = layernorm2x_ref(x2, w1, b1, w2, b2, eps=1e-5)
    assert out2.shape == (N, 2 * C, H2, W2)
    assert jnp.allclose(out2, ref2, atol=1e-5, rtol=1e-5), "mismatch vs reference (partial block)"

    print("KERNEL_OK")
</pallas_src>

<mosaic_0001>
module attributes {stable_mosaic.version = 11 : i64} {
  func.func @_layernorm2x_kernel(%arg0: i32, %arg1: i32, %arg2: memref<1x4x256xf32, #tpu.memory_space<vmem>>, %arg3: memref<4x1xf32, #tpu.memory_space<vmem>>, %arg4: memref<4x1xf32, #tpu.memory_space<vmem>>, %arg5: memref<4x1xf32, #tpu.memory_space<vmem>>, %arg6: memref<4x1xf32, #tpu.memory_space<vmem>>, %arg7: memref<1x8x256xf32, #tpu.memory_space<vmem>>) attributes {dimension_semantics = [#tpu.dimension_semantics<parallel>, #tpu.dimension_semantics<parallel>], iteration_bounds = array<i64: 2, 1>, scalar_prefetch = 0 : i64, scratch_operands = 0 : i64, tpu.core_type = #tpu.core_type<tc>, window_params = [{transform_indices = @transform_0, window_bounds = array<i64: 1, 4, 256>}, {pipeline_mode = #tpu.pipeline_mode<synchronous>, transform_indices = @transform_1, window_bounds = array<i64: 4, 1>}, {pipeline_mode = #tpu.pipeline_mode<synchronous>, transform_indices = @transform_2, window_bounds = array<i64: 4, 1>}, {pipeline_mode = #tpu.pipeline_mode<synchronous>, transform_indices = @transform_3, window_bounds = array<i64: 4, 1>}, {pipeline_mode = #tpu.pipeline_mode<synchronous>, transform_indices = @transform_4, window_bounds = array<i64: 4, 1>}, {transform_indices = @transform_5, window_bounds = array<i64: 1, 8, 256>}]} {
    %c0 = arith.constant 0 : index
    %c0_0 = arith.constant 0 : index
    %c0_1 = arith.constant 0 : index
    %0 = vector.load %arg2[%c0, %c0_0, %c0_1] : memref<1x4x256xf32, #tpu.memory_space<vmem>>, vector<1x4x256xf32>
    %1 = vector.shape_cast %0 : vector<1x4x256xf32> to vector<4x256xf32>
    %cst = arith.constant dense<0.000000e+00> : vector<256xf32>
    %2 = vector.multi_reduction <add>, %1, %cst [0] : vector<4x256xf32> to vector<256xf32>
    %3 = vector.shape_cast %2 : vector<256xf32> to vector<1x256xf32>
    %cst_2 = arith.constant 2.500000e-01 : f32
    %4 = vector.broadcast %cst_2 : f32 to vector<1x256xf32>
    %5 = arith.mulf %3, %4 : vector<1x256xf32>
    %6 = vector.broadcast %5 : vector<1x256xf32> to vector<4x256xf32>
    %7 = arith.subf %1, %6 : vector<4x256xf32>
    %8 = arith.mulf %7, %7 : vector<4x256xf32>
    %cst_3 = arith.constant dense<0.000000e+00> : vector<256xf32>
    %9 = vector.multi_reduction <add>, %8, %cst_3 [0] : vector<4x256xf32> to vector<256xf32>
    %10 = vector.shape_cast %9 : vector<256xf32> to vector<1x256xf32>
    %cst_4 = arith.constant 2.500000e-01 : f32
    %11 = vector.broadcast %cst_4 : f32 to vector<1x256xf32>
    %12 = arith.mulf %10, %11 : vector<1x256xf32>
    %cst_5 = arith.constant 9.99999974E-6 : f32
    %13 = vector.broadcast %cst_5 : f32 to vector<1x256xf32>
    %14 = arith.addf %12, %13 : vector<1x256xf32>
    %15 = math.rsqrt %14 : vector<1x256xf32>
    %16 = vector.broadcast %15 : vector<1x256xf32> to vector<4x256xf32>
    %17 = arith.mulf %7, %16 : vector<4x256xf32>
    %c0_6 = arith.constant 0 : index
    %c0_7 = arith.constant 0 : index
    %18 = vector.load %arg3[%c0_6, %c0_7] : memref<4x1xf32, #tpu.memory_space<vmem>>, vector<4x1xf32>
    %c0_8 = arith.constant 0 : index
    %c0_9 = arith.constant 0 : index
    %19 = vector.load %arg4[%c0_8, %c0_9] : memref<4x1xf32, #tpu.memory_space<vmem>>, vector<4x1xf32>
    %c0_10 = arith.constant 0 : index
    %c0_11 = arith.constant 0 : index
    %20 = vector.load %arg5[%c0_10, %c0_11] : memref<4x1xf32, #tpu.memory_space<vmem>>, vector<4x1xf32>
    %c0_12 = arith.constant 0 : index
    %c0_13 = arith.constant 0 : index
    %21 = vector.load %arg6[%c0_12, %c0_13] : memref<4x1xf32, #tpu.memory_space<vmem>>, vector<4x1xf32>
    %22 = vector.broadcast %18 : vector<4x1xf32> to vector<4x256xf32>
    %23 = arith.mulf %22, %17 : vector<4x256xf32>
    %24 = vector.broadcast %19 : vector<4x1xf32> to vector<4x256xf32>
    %25 = arith.addf %23, %24 : vector<4x256xf32>
    %c0_14 = arith.constant 0 : index
    %c0_15 = arith.constant 0 : index
    %c0_16 = arith.constant 0 : index
    %26 = vector.load %arg7[%c0_14, %c0_15, %c0_16] : memref<1x8x256xf32, #tpu.memory_space<vmem>>, vector<1x4x256xf32>
    %27 = vector.shape_cast %26 : vector<1x4x256xf32> to vector<4x256xf32>
    %28 = vector.shape_cast %25 : vector<4x256xf32> to vector<1x4x256xf32>
    tpu.vector_store %arg7[%c0_14, %c0_15, %c0_16], %28 {strides = array<i32>} : memref<1x8x256xf32, #tpu.memory_space<vmem>>, vector<1x4x256xf32>,
    %29 = vector.broadcast %20 : vector<4x1xf32> to vector<4x256xf32>
    %30 = arith.mulf %29, %17 : vector<4x256xf32>
    %31 = vector.broadcast %21 : vector<4x1xf32> to vector<4x256xf32>
    %32 = arith.addf %30, %31 : vector<4x256xf32>
    %c0_17 = arith.constant 0 : index
    %c4 = arith.constant 4 : index
    %c0_18 = arith.constant 0 : index
    %33 = vector.load %arg7[%c0_17, %c4, %c0_18] : memref<1x8x256xf32, #tpu.memory_space<vmem>>, vector<1x4x256xf32>
    %34 = vector.shape_cast %33 : vector<1x4x256xf32> to vector<4x256xf32>
    %35 = vector.shape_cast %32 : vector<4x256xf32> to vector<1x4x256xf32>
    tpu.vector_store %arg7[%c0_17, %c4, %c0_18], %35 {strides = array<i32>} : memref<1x8x256xf32, #tpu.memory_space<vmem>>, vector<1x4x256xf32>,
    return
  }
  func.func @transform_0(%arg0: i32, %arg1: i32) -> (i32, i32, i32) {
    %c0_i32 = arith.constant 0 : i32
    %c0_i32_0 = arith.constant 0 : i32
    return %arg0, %c0_i32, %arg1 : i32, i32, i32
  }
  func.func @transform_1(%arg0: i32, %arg1: i32) -> (i32, i32) {
    %c0_i32 = arith.constant 0 : i32
    %c0_i32_0 = arith.constant 0 : i32
    %c0_i32_1 = arith.constant 0 : i32
    return %c0_i32, %c0_i32_0 : i32, i32
  }
  func.func @transform_2(%arg0: i32, %arg1: i32) -> (i32, i32) {
    %c0_i32 = arith.constant 0 : i32
    %c0_i32_0 = arith.constant 0 : i32
    %c0_i32_1 = arith.constant 0 : i32
    return %c0_i32, %c0_i32_0 : i32, i32
  }
  func.func @transform_3(%arg0: i32, %arg1: i32) -> (i32, i32) {
    %c0_i32 = arith.constant 0 : i32
    %c0_i32_0 = arith.constant 0 : i32
    %c0_i32_1 = arith.constant 0 : i32
    return %c0_i32, %c0_i32_0 : i32, i32
  }
  func.func @transform_4(%arg0: i32, %arg1: i32) -> (i32, i32) {
    %c0_i32 = arith.constant 0 : i32
    %c0_i32_0 = arith.constant 0 : i32
    %c0_i32_1 = arith.constant 0 : i32
    return %c0_i32, %c0_i32_0 : i32, i32
  }
  func.func @transform_5(%arg0: i32, %arg1: i32) -> (i32, i32, i32) {
    %c0_i32 = arith.constant 0 : i32
    %c0_i32_0 = arith.constant 0 : i32
    return %arg0, %c0_i32, %arg1 : i32, i32, i32
  }
}

</mosaic_0001>

<llo_original>
// kernel: tpu_custom_call.1
$region0: #{tpu_custom_call.1}
  #allocation0 [shape = 'u32[]', space=smem, size = 0x4, offset = 0x4, fixed_abs, tag = 'smem constant byte address 0x4 - core index']
  #allocation1 [shape = 'u32[144,128]{1,0:T(1,128)}', space=vmem, size = 0x12000, scoped, tag = 'internal scratch']
  %s0 = inlined_call_operand.vmem [shape: f32[2,4,256], index: 0, kind: input, shape index: {}]
  %s1 = inlined_call_operand.vmem [shape: f32[4,1], index: 1, kind: input, shape index: {}]
  %s2 = inlined_call_operand.vmem [shape: f32[4,1], index: 2, kind: input, shape index: {}]
  %s3 = inlined_call_operand.vmem [shape: f32[4,1], index: 3, kind: input, shape index: {}]
  %s4 = inlined_call_operand.vmem [shape: f32[4,1], index: 4, kind: input, shape index: {}]
  %s5 = inlined_call_operand.hbm [shape: f32[2,8,256], index: 5, kind: output, shape index: {}]
  %s6 = sld [smem:[#allocation0]]
  $region53: #{tpu_custom_call.1} parent=0
    _
  %s8 = ssub.s32 1, %s6
  %s9 = scalar_select 0, %s8, %s6
  $region1: #{tpu_custom_call.1} parent=0
    #allocation2 [shape = 'u8[16384]{0}', space=vmem, size = 0x4000, scoped, tag = 'output window, operand 0']
    #allocation3 [shape = 's32[2]{0}', space=sflag, size = 0x8, scoped, tag = 'scoped memory for tpu_custom_call.1']
    %10 = vsyncpa [#allocation3], 0
    %s11 = scalar_lea.sflag [#allocation3], 1
    %12 = vsyncpa %s11, 0
    loop: start=0, step=1, limit=4
    $region2: #{tpu_custom_call.1} parent=1 // loop_pre_header
      _
    $region3: #{tpu_custom_call.1} parent=1 // loop_header
      %s14 = sphi 0, %s18
      %p15 = scmp.ge.s32.totalorder %s14, 4
      %s21 = sphi 0, %s33
      %s22 = sphi 0, %s29
      %s23 = sphi 0, %s21
      %s24 = sphi 0, %s22
      %s25 = sphi 0, %s23
      %s26 = sphi 0, %s24
      %s38 = sphi 0, %s40
      %s41 = sphi 0, %s38
      %s42 = sphi 0, %s41
      %s58 = sphi 0, %s42
      %s62 = sphi 0, %s62
      %s64 = sphi 0, %s62
      %s65 = sphi 0, %s64
      %s79 = sphi 0, %s65
      %s83 = sphi 0, %s83
      %s85 = sphi 0, %s83
      %s86 = sphi 0, %s85
      %s100 = sphi 0, %s86
      %s104 = sphi 0, %s104
      %s106 = sphi 0, %s104
      %s107 = sphi 0, %s106
      %s121 = sphi 0, %s107
      %s125 = sphi 0, %s125
      %s127 = sphi 0, %s125
      %s128 = sphi 0, %s127
      %s142 = sphi 0, %s128
      %s150 = sphi 0, %s152
      %s153 = sphi 0, %s150
      %s154 = sphi 0, %s153
      %s170 = sphi 0, %s154
    $region4: #{tpu_custom_call.1} parent=1 // loop_header_branch
      %17 = sbr.rel (%p15) target = $region8
    $region5: #{tpu_custom_call.1} parent=1 // loop_body
      %s19 = ssub.s32 %s14, 1
      %s20 = ssub.s32 %s14, 2
      %s27 = sadd.s32 1, %s22
      %p28 = scmp.ge.s32.totalorder %s27, 1
      %s29 = scalar_select %p28, 0, %s27
      %s30 = sadd.s32 1, %s21
      %s31 = scalar_select %p28, %s30, %s21
      %p32 = scmp.ge.s32.totalorder %s31, 2
      %s33 = scalar_select %p32, 0, %s31
      %s34 = ssub.s32 %s21, %s33
      %s35 = ssub.s32 %s22, %s29
      %s36 = sor.u32 %s34, %s35
      %p37 = scmp.eq.s32.totalorder %s36, 0
      %s39 = sadd.s32 %s38, 1
      %s40 = scalar_select %p37, %s38, %s39
      %p43 = pneg %p37
      %p44 = scmp.eq.s32.totalorder %s14, 1
      %p45 = por %p43, %p44
      %p46 = scmp.ne.s32.totalorder %s38, %s41
      %p47 = scmp.eq.s32.totalorder %s14, 0
      %p48 = por %p46, %p47
      %p49 = scmp.ne.s32.totalorder %s38, %s41
      %p50 = scmp.eq.s32.totalorder %s19, 1
      %p51 = por %p49, %p50
      %p52 = scmp.ne.s32.totalorder %s41, %s42
      %p53 = scmp.eq.s32.totalorder %s19, 0
      %p54 = por %p52, %p53
      %p55 = scmp.ne.s32.totalorder %s41, %s42
      %p56 = scmp.eq.s32.totalorder %s20, 1
      %p57 = por %p55, %p56
      %p59 = scmp.ne.s32.totalorder %s42, %s58
      %p60 = scmp.eq.s32.totalorder %s20, 0
      %p61 = por %p59, %p60
      %s63 = sadd.s32 %s62, 1
      %p66 = scmp.eq.s32.totalorder %s14, 1
      %p67 = scmp.ne.s32.totalorder %s62, %s64
      %p68 = scmp.eq.s32.totalorder %s14, 0
      %p69 = por %p67, %p68
      %p70 = scmp.ne.s32.totalorder %s62, %s64
      %p71 = scmp.eq.s32.totalorder %s19, 1
      %p72 = por %p70, %p71
      %p73 = scmp.ne.s32.totalorder %s64, %s65
      %p74 = scmp.eq.s32.totalorder %s19, 0
      %p75 = por %p73, %p74
      %p76 = scmp.ne.s32.totalorder %s64, %s65
      %p77 = scmp.eq.s32.totalorder %s20, 1
      %p78 = por %p76, %p77
      %p80 = scmp.ne.s32.totalorder %s65, %s79
      %p81 = scmp.eq.s32.totalorder %s20, 0
      %p82 = por %p80, %p81
      %s84 = sadd.s32 %s83, 1
      %p87 = scmp.eq.s32.totalorder %s14, 1
      %p88 = scmp.ne.s32.totalorder %s83, %s85
      %p89 = scmp.eq.s32.totalorder %s14, 0
      %p90 = por %p88, %p89
      %p91 = scmp.ne.s32.totalorder %s83, %s85
      %p92 = scmp.eq.s32.totalorder %s19, 1
      %p93 = por %p91, %p92
      %p94 = scmp.ne.s32.totalorder %s85, %s86
      %p95 = scmp.eq.s32.totalorder %s19, 0
      %p96 = por %p94, %p95
      %p97 = scmp.ne.s32.totalorder %s85, %s86
      %p98 = scmp.eq.s32.totalorder %s20, 1
      %p99 = por %p97, %p98
      %p101 = scmp.ne.s32.totalorder %s86, %s100
      %p102 = scmp.eq.s32.totalorder %s20, 0
      %p103 = por %p101, %p102
      %s105 = sadd.s32 %s104, 1
      %p108 = scmp.eq.s32.totalorder %s14, 1
      %p109 = scmp.ne.s32.totalorder %s104, %s106
      %p110 = scmp.eq.s32.totalorder %s14, 0
      %p111 = por %p109, %p110
      %p112 = scmp.ne.s32.totalorder %s104, %s106
      %p113 = scmp.eq.s32.totalorder %s19, 1
      %p114 = por %p112, %p113
      %p115 = scmp.ne.s32.totalorder %s106, %s107
      %p116 = scmp.eq.s32.totalorder %s19, 0
      %p117 = por %p115, %p116
      %p118 = scmp.ne.s32.totalorder %s106, %s107
      %p119 = scmp.eq.s32.totalorder %s20, 1
      %p120 = por %p118, %p119
      %p122 = scmp.ne.s32.totalorder %s107, %s121
      %p123 = scmp.eq.s32.totalorder %s20, 0
      %p124 = por %p122, %p123
      %s126 = sadd.s32 %s125, 1
      %p129 = scmp.eq.s32.totalorder %s14, 1
      %p130 = scmp.ne.s32.totalorder %s125, %s127
      %p131 = scmp.eq.s32.totalorder %s14, 0
      %p132 = por %p130, %p131
      %p133 = scmp.ne.s32.totalorder %s125, %s127
      %p134 = scmp.eq.s32.totalorder %s19, 1
      %p135 = por %p133, %p134
      %p136 = scmp.ne.s32.totalorder %s127, %s128
      %p137 = scmp.eq.s32.totalorder %s19, 0
      %p138 = por %p136, %p137
      %p139 = scmp.ne.s32.totalorder %s127, %s128
      %p140 = scmp.eq.s32.totalorder %s20, 1
      %p141 = por %p139, %p140
      %p143 = scmp.ne.s32.totalorder %s128, %s142
      %p144 = scmp.eq.s32.totalorder %s20, 0
      %p145 = por %p143, %p144
      %s146 = ssub.s32 %s21, %s33
      %s147 = ssub.s32 %s22, %s29
      %s148 = sor.u32 %s146, %s147
      %p149 = scmp.eq.s32.totalorder %s148, 0
      %s151 = sadd.s32 %s150, 1
      %s152 = scalar_select %p149, %s150, %s151
      %p155 = pneg %p149
      %p156 = scmp.eq.s32.totalorder %s14, 1
      %p157 = por %p155, %p156
      %p158 = scmp.ne.s32.totalorder %s150, %s153
      %p159 = scmp.eq.s32.totalorder %s14, 0
      %p160 = por %p158, %p159
      %p161 = scmp.ne.s32.totalorder %s150, %s153
      %p162 = scmp.eq.s32.totalorder %s19, 1
      %p163 = por %p161, %p162
      %p164 = scmp.ne.s32.totalorder %s153, %s154
      %p165 = scmp.eq.s32.totalorder %s19, 0
      %p166 = por %p164, %p165
      %p167 = scmp.ne.s32.totalorder %s153, %s154
      %p168 = scmp.eq.s32.totalorder %s20, 1
      %p169 = por %p167, %p168
      %p171 = scmp.ne.s32.totalorder %s154, %s170
      %p172 = scmp.eq.s32.totalorder %s20, 0
      %p173 = por %p171, %p172
      %p174 = scmp.le.s32.totalorder 1, %s14
      %p175 = scmp.lt.s32.totalorder %s14, 3
      %p176 = pnand %p174, %p175
      %p177 = pneg %p176
      // Predicated region
      $region9: #{tpu_custom_call.1} parent=5 // pred_check
        _
      $region10: #{tpu_custom_call.1} parent=5 // pred_check_branch
        %179 = sbr.rel (%p176) target = $region12
      $region11: #{tpu_custom_call.1} parent=5 // pred_region
        %s180 = ssub.s32 %s14, 1
        // Predicated region
        $region13: #{tpu_custom_call.1} parent=11 // pred_check
          %p181 = pneg %p75
        $region14: #{tpu_custom_call.1} parent=11 // pred_check_branch
          %183 = sbr.rel (%p181) target = $region16
        $region15: #{tpu_custom_call.1} parent=11 // pred_region
          _
        $region16: #{tpu_custom_call.1} parent=11 // pred_fallthru
          _
        // Predicated region
        $region17: #{tpu_custom_call.1} parent=11 // pred_check
          %p184 = pneg %p96
        $region18: #{tpu_custom_call.1} parent=11 // pred_check_branch
          %186 = sbr.rel (%p184) target = $region20
        $region19: #{tpu_custom_call.1} parent=11 // pred_region
          _
        $region20: #{tpu_custom_call.1} parent=11 // pred_fallthru
          _
        // Predicated region
        $region21: #{tpu_custom_call.1} parent=11 // pred_check
          %p187 = pneg %p117
        $region22: #{tpu_custom_call.1} parent=11 // pred_check_branch
          %189 = sbr.rel (%p187) target = $region24
        $region23: #{tpu_custom_call.1} parent=11 // pred_region
          _
        $region24: #{tpu_custom_call.1} parent=11 // pred_fallthru
          _
        // Predicated region
        $region25: #{tpu_custom_call.1} parent=11 // pred_check
          %p190 = pneg %p138
        $region26: #{tpu_custom_call.1} parent=11 // pred_check_branch
          %192 = sbr.rel (%p190) target = $region28
        $region27: #{tpu_custom_call.1} parent=11 // pred_region
          _
        $region28: #{tpu_custom_call.1} parent=11 // pred_fallthru
          _
      $region12: #{tpu_custom_call.1} parent=5 // pred_fallthru
        _
      %p193 = scmp.lt.s32.totalorder %s14, 2
      // Predicated region
      $region29: #{tpu_custom_call.1} parent=5 // pred_check
        %p194 = pneg %p193
      $region30: #{tpu_custom_call.1} parent=5 // pred_check_branch
        %196 = sbr.rel (%p194) target = $region32
      $region31: #{tpu_custom_call.1} parent=5 // pred_region
        // Predicated region
        $region33: #{tpu_custom_call.1} parent=31 // pred_check
          %p197 = pneg %p48
        $region34: #{tpu_custom_call.1} parent=31 // pred_check_branch
          %199 = sbr.rel (%p197) target = $region36
        $region35: #{tpu_custom_call.1} parent=31 // pred_region
          %s200 = smul.u32 2, %s22
          %p201 = scmp.lt.s32.totalorder %s21, 1
          %s202 = scalar_select %p201, %s21, 1
          %p203 = scmp.lt.s32.totalorder %s200, 1
          %s204 = scalar_select %p203, %s200, 1
          %s205 = smul.addr %s202, 2
          %s206 = sadd.s32 %s204, %s205
          %s207 = smul.addr %s206, 4
          %s208 = scalar_lea.vmem %s0, %s207
          %s209 = smul.u32 2, %s22
        $region36: #{tpu_custom_call.1} parent=31 // pred_fallthru
          _
      $region32: #{tpu_custom_call.1} parent=5 // pred_fallthru
        _
      %p210 = scmp.le.s32.totalorder 1, %s14
      %p211 = scmp.lt.s32.totalorder %s14, 3
      %p212 = pnand %p210, %p211
      %p213 = pneg %p212
      // Predicated region
      $region37: #{tpu_custom_call.1} parent=5 // pred_check
        _
      $region38: #{tpu_custom_call.1} parent=5 // pred_check_branch
        %215 = sbr.rel (%p212) target = $region40
      $region39: #{tpu_custom_call.1} parent=5 // pred_region
        %s216 = ssub.s32 %s14, 1
        %s217 = smul.u32 2, %s24
        %p218 = scmp.lt.s32.totalorder %s23, 1
        %s219 = scalar_select %p218, %s23, 1
        %p220 = scmp.lt.s32.totalorder %s217, 1
        %s221 = scalar_select %p220, %s217, 1
        %s222 = smul.addr %s219, 2
        %s223 = sadd.s32 %s221, %s222
        %s224 = smul.addr %s223, 4
        %s225 = scalar_lea.vmem %s0, %s224
        %p226 = pneg %p54
        %p227 = pneg %p51
        %p228 = pneg %p75
        %p229 = pneg %p72
        %p230 = pneg %p96
        %p231 = pneg %p93
        %p232 = pneg %p117
        %p233 = pneg %p114
        %p234 = pneg %p138
        %p235 = pneg %p135
        %p236 = pneg %p166
        %p237 = pneg %p163
        %s238 = sand.u32 %s153, 1
        %s239 = scalar_lea.sflag [#allocation3], %s238
        %s240 = sand.u32 %s153, 1
        %s241 = smul.addr %s240, 16
        %s242 = scalar_lea.vmem [#allocation2], %s241
        %s243 = smul.u32 2, %s24
        %p244 = scmp.lt.s32.totalorder %s23, 1
        %s245 = scalar_select %p244, %s23, 1
        %p246 = scmp.lt.s32.totalorder %s243, 1
        %s247 = scalar_select %p246, %s243, 1
        %s248 = smul.addr %s245, 2
        %s249 = sadd.s32 %s247, %s248
        %s250 = smul.addr %s249, 4
        %s251 = scalar_lea.vmem %s0, %s250
        %s252 = smul.u32 2, %s24
        %s253 = smul.u32 2, %s24
        %v254 = vld [vmem:[%s251] sm:$0xff]
        %v256 = vcombine.high %v254, %v254
        %vm258 = vcmask 1043456
        %v259 = vsel %vm258, %v254, 0.0
        %v260 = vrot.slane %v259, 4
        %v261 = vadd.f32 %v259, %v260
        %v262 = vrot.slane %v261, 2
        %v263 = vadd.f32 %v261, %v262
        %v264 = vrot.slane %v263, 1
        %v265 = vadd.f32 %v263, %v264
        %v266 = vsel %vm258, %v256, 0.0
        %v267 = vrot.slane %v266, 4
        %v268 = vadd.f32 %v266, %v267
        %v269 = vrot.slane %v268, 2
        %v270 = vadd.f32 %v268, %v269
        %v271 = vrot.slane %v270, 1
        %v272 = vadd.f32 %v270, %v271
        %v273 = vmul.f32 %v265, 0.25
        %v274 = vmul.f32 %v272, 0.25
        %v277 = vcombine.low %v273, %v274
        %v279 = vsub.f32 %v254, %v277
        %v280 = vmul.f32 %v279, %v279
        %v282 = vcombine.high %v280, %v280
        %v284 = vsel %vm258, %v280, 0.0
        %v285 = vrot.slane %v284, 4
        %v286 = vadd.f32 %v284, %v285
        %v287 = vrot.slane %v286, 2
        %v288 = vadd.f32 %v286, %v287
        %v289 = vrot.slane %v288, 1
        %v290 = vadd.f32 %v288, %v289
        %v291 = vsel %vm258, %v282, 0.0
        %v292 = vrot.slane %v291, 4
        %v293 = vadd.f32 %v291, %v292
        %v294 = vrot.slane %v293, 2
        %v295 = vadd.f32 %v293, %v294
        %v296 = vrot.slane %v295, 1
        %v297 = vadd.f32 %v295, %v296
        %v298 = vmul.f32 %v290, 0.25
        %v299 = vmul.f32 %v297, 0.25
        %v300 = vadd.f32 %v298, 1e-05
        %v301 = vadd.f32 %v299, 1e-05
        %v302 = vrsqrt.pop %v300
        %v303 = vrsqrt.pop %v301
        %v306 = vcombine.low %v302, %v303
        %v308 = vmul.f32 %v279, %v306
        %v309 = vld [vmem:[%s1] sm:$0xf]
        %v310 = vld [vmem:[%s2] sm:$0xf]
        %v311 = vld [vmem:[%s3] sm:$0xf]
        %v312 = vld [vmem:[%s4] sm:$0xf]
        %314 = vset.pattern.permute.xlu0 0
        %315 = vperm.xlu0 %314, %v309
        %v316 = vpop.permute.xlu0 %315
        %v319 = vcombine.high %v308, %v308
        %v321 = vmul.f32 %v316, %v308
        %v322 = vmul.f32 %v316, %v319
        %324 = vset.pattern.permute.xlu0 0
        %325 = vperm.xlu0 %324, %v310
        %v326 = vpop.permute.xlu0 %325
        %v328 = vadd.f32 %v321, %v326
        %v329 = vadd.f32 %v322, %v326
        %330 = vst [vmem:[%s242] sm:$0xf] %v328
        %331 = vst [vmem:[%s242 + $0x8] sm:$0xf] %v329
        %333 = vset.pattern.permute.xlu0 0
        %334 = vperm.xlu0 %333, %v311
        %v335 = vpop.permute.xlu0 %334
        %v337 = vmul.f32 %v335, %v308
        %v338 = vmul.f32 %v335, %v319
        %340 = vset.pattern.permute.xlu0 0
        %341 = vperm.xlu0 %340, %v312
        %v342 = vpop.permute.xlu0 %341
        %v344 = vadd.f32 %v337, %v342
        %v345 = vadd.f32 %v338, %v342
        %v348 = vrot.slane %v344, 4
        %v349 = vrot.slane %v345, 4
        %352 = vst [vmem:[%s242] sm:$0xf0] %v348
        %353 = vst [vmem:[%s242 + $0x8] sm:$0xf0] %v349
        %s354 = sand.u32 %s153, 1
        %s355 = scalar_lea.sflag [#allocation3], %s354
        %s356 = sand.u32 %s153, 1
        %s357 = smul.addr %s356, 16
        %s358 = scalar_lea.vmem [#allocation2], %s357
        // Predicated region
        $region41: #{tpu_custom_call.1} parent=39 // pred_check
          %p359 = pneg %p163
        $region42: #{tpu_custom_call.1} parent=39 // pred_check_branch
          %361 = sbr.rel (%p359) target = $region44
        $region43: #{tpu_custom_call.1} parent=39 // pred_region
          %s362 = smul.u32 2, %s24
          %s364 = ssub.s32 256, 256
          %365 = vsyncadd %s355, %s364
          %s366 = smul.addr %s23, 2
          %s367 = sadd.s32 %s362, %s366
          %s368 = smul.addr %s367, 128
          %s369 = scalar_lea.hbm %s5, %s368
          %s371 = sshll.u32 %s358, 4
          %s372 = int_to_ptr.vmem [resolvable:$true] %s371
          %374 = dma.vmem_to_hbm [thread:$0]  %s372, 256, %s369, %s355
        $region44: #{tpu_custom_call.1} parent=39 // pred_fallthru
          _
      $region40: #{tpu_custom_call.1} parent=5 // pred_fallthru
        _
      %p375 = scmp.le.s32.totalorder 2, %s14
      // Predicated region
      $region45: #{tpu_custom_call.1} parent=5 // pred_check
        %p376 = pneg %p375
      $region46: #{tpu_custom_call.1} parent=5 // pred_check_branch
        %378 = sbr.rel (%p376) target = $region48
      $region47: #{tpu_custom_call.1} parent=5 // pred_region
        %s379 = ssub.s32 %s14, 2
        // Predicated region
        $region49: #{tpu_custom_call.1} parent=47 // pred_check
          %p380 = pneg %p169
        $region50: #{tpu_custom_call.1} parent=47 // pred_check_branch
          %382 = sbr.rel (%p380) target = $region52
        $region51: #{tpu_custom_call.1} parent=47 // pred_region
          %s383 = sand.u32 %s154, 1
          %s384 = scalar_lea.sflag [#allocation3], %s383
          %s385 = sand.u32 %s154, 1
          %s386 = smul.addr %s385, 16
          %s387 = scalar_lea.vmem [#allocation2], %s386
          %388 = dma.done %s384, 256
        $region52: #{tpu_custom_call.1} parent=47 // pred_fallthru
          _
      $region48: #{tpu_custom_call.1} parent=5 // pred_fallthru
        _
    $region6: #{tpu_custom_call.1} parent=1 // loop_footer
      %s18 = sadd.s32 1, %s14
    $region7: #{tpu_custom_call.1} parent=1 // loop_footer_branch
      %13 = sbr.rel target = $region3
    $region8: #{tpu_custom_call.1} parent=1 // loop_exit
      _
    %389 = vsyncpa [#allocation3], 1
    %s390 = scalar_lea.sflag [#allocation3], 1
    %391 = vsyncpa %s390, 1

</llo_original>
